<compile_context>
chip_gen: v6e
topology: v6e:2x2x1
jax: 0.10.0
libtpu: 0.0.40
codegen_flags: <defaults>
</compile_context>

<pallas_src>
import functools

import jax
import jax.numpy as jnp
from jax.experimental import pallas as pl
from jax.experimental.pallas import tpu as pltpu


def _round_up(v, m):
    return (v + m - 1) // m * m


def _make_svm_kernel(kernel_type, gamma, r, degree, num_classes, n_elems):
    """Build the Pallas kernel body for one SVM classifier variant."""

    if kernel_type == "rbf":
        inv_n = 1.0 / n_elems
        # torch.std is unbiased; n_elems == 1 gives nan in torch as well.
        inv_nm1 = 1.0 / (n_elems - 1) if n_elems > 1 else float("nan")

    def kernel(x_ref, w_ref, x2_ref, w2_ref, b_ref, o_ref, acc_ref):
        k = pl.program_id(1)

        @pl.when(k == 0)
        def _():
            acc_ref[...] = jnp.zeros_like(acc_ref)

        # bf16 x bf16 on the MXU, f32 accumulate (contract over the D tile).
        acc_ref[...] += jax.lax.dot_general(
            x_ref[...], w_ref[...], (((1,), (1,)), ((), ())),
            preferred_element_type=jnp.float32)

        @pl.when(k == pl.num_programs(1) - 1)
        def _():
            xwT = acc_ref[...]                      # (tb, C_pad) f32
            b = b_ref[...]                          # (1, C_pad)  f32

            if kernel_type == "linear":
                out = xwT + b
            elif kernel_type in ("poly", "sigmoid"):
                # NOTE: the reference routes 'sigmoid' to PolySVM (its ctor call
                # is even missing `degree`, i.e. it would TypeError in torch);
                # we use the poly formula here.
                out = (gamma * xwT + r) ** degree + b
            else:
                # Euclidean cdist via ||x||^2 + ||w||^2 - 2 x.w (norms hoisted).
                x2 = x2_ref[...]                    # (tb, 1)
                w2 = w2_ref[...]                    # (1, C_pad)
                d2 = jnp.maximum(x2 + w2 - 2.0 * xwT, 0.0)
                dists = jnp.sqrt(d2)                # (tb, C_pad)
                if kernel_type == "custom":
                    out = (gamma * dists + r) ** degree + b
                else:  # rbf
                    # Global mean / unbiased std over the REAL (B, num_classes)
                    # entries only (padded class columns are masked out; the
                    # batch is never padded for rbf).
                    col = jax.lax.broadcasted_iota(jnp.int32, dists.shape, 1)
                    mask = col < num_classes
                    dm = jnp.where(mask, dists, 0.0)
                    mean = jnp.sum(dm) * inv_n
                    diff = dists - mean
                    var = jnp.sum(jnp.where(mask, diff * diff, 0.0)) * inv_nm1
                    dn = diff * jax.lax.rsqrt(var)  # EUP rsqrt instead of divide
                    out = jnp.exp(-gamma * dn * dn) + b

            o_ref[...] = out.astype(o_ref.dtype)

    return kernel


@functools.partial(jax.jit, static_argnames=("kernel_type", "gamma", "r", "degree"))
def svm_model_forward(x_nchw, weights, bias, *, kernel_type, gamma, r, degree):
    """SVM_Model.forward with feature_extractor=None.

    x_nchw: (B, C, H, W) -> flattened to (B, C*H*W)
    weights: (num_classes, C*H*W), bias: (num_classes,)
    returns: (B, num_classes) float32
    """
    if kernel_type not in ("linear", "poly", "sigmoid", "rbf", "custom"):
        raise ValueError("không hỗ trợ kernel này")

    B = x_nchw.shape[0]
    num_classes, D = weights.shape
    x_flat = x_nchw.reshape(B, -1).astype(jnp.float32)      # x.view(B, -1)

    # Hoisted f32 row norms (w2 is constant per model; x2 is a tiny reduction).
    x2 = jnp.sum(x_flat * x_flat, axis=-1, keepdims=True)               # (B, 1)
    w_f32 = weights.astype(jnp.float32)
    w2 = jnp.sum(w_f32 * w_f32, axis=-1)                                # (C,)

    # ---- padding / tiling -------------------------------------------------
    C_pad = _round_up(num_classes, 128)        # lane-dense output & MXU result
    tk = 512 if D >= 512 else _round_up(D, 256)  # 256-multiple for v6e/v7x MXU
    D_pad = _round_up(D, tk)
    if kernel_type == "rbf":
        # Batch rows couple through the global mean/std -> single batch tile,
        # no row padding (padded rows would corrupt the statistics).
        tb, B_pad = B, B
    else:
        tb = min(_round_up(B, 8), 128)
        B_pad = _round_up(B, tb)

    x_bf = jnp.pad(x_flat, ((0, B_pad - B), (0, D_pad - D))).astype(jnp.bfloat16)
    w_bf = jnp.pad(w_f32, ((0, C_pad - num_classes), (0, D_pad - D))).astype(jnp.bfloat16)
    x2_p = jnp.pad(x2, ((0, B_pad - B), (0, 0)))
    w2_p = jnp.pad(w2, (0, C_pad - num_classes)).reshape(1, C_pad)
    b_p = jnp.pad(bias.astype(jnp.float32), (0, C_pad - num_classes)).reshape(1, C_pad)

    grid = (B_pad // tb, D_pad // tk)
    n_elems = B * num_classes
    kernel = _make_svm_kernel(kernel_type, float(gamma), float(r), degree,
                              num_classes, n_elems)

    # Explicit VMEM budget (double-buffered inputs/outputs + acc scratch),
    # capped at v7x's 64 MiB physical VMEM.
    vmem_est = (2 * (tb * tk * 2 + C_pad * tk * 2)   # bf16 x / w tiles
                + 2 * (tb * 4 + 2 * C_pad * 4)       # x2 / w2 / bias
                + 2 * tb * C_pad * 4                 # output tile
                + tb * C_pad * 4)                    # f32 accumulator
    vmem_limit = int(min(max(4 * vmem_est, 16 << 20), 64 << 20))

    cost = pl.CostEstimate(
        flops=2 * B_pad * C_pad * D_pad,
        transcendentals=(B_pad * C_pad if kernel_type in ("rbf", "custom") else 0),
        bytes_accessed=x_bf.size * 2 + w_bf.size * 2 + B_pad * C_pad * 4,
    )

    out = pl.pallas_call(
        kernel,
        out_shape=jax.ShapeDtypeStruct((B_pad, C_pad), jnp.float32),
        grid_spec=pltpu.PrefetchScalarGridSpec(
            num_scalar_prefetch=0,
            grid=grid,
            in_specs=[
                pl.BlockSpec((tb, tk), lambda i, k: (i, k)),       # x tile
                pl.BlockSpec((C_pad, tk), lambda i, k: (0, k)),    # w tile
                pl.BlockSpec((tb, 1), lambda i, k: (i, 0)),        # ||x||^2
                pl.BlockSpec((1, C_pad), lambda i, k: (0, 0)),     # ||w||^2
                pl.BlockSpec((1, C_pad), lambda i, k: (0, 0)),     # bias
            ],
            out_specs=pl.BlockSpec((tb, C_pad), lambda i, k: (i, 0)),
            scratch_shapes=[pltpu.VMEM((tb, C_pad), jnp.float32)],
        ),
        compiler_params=pltpu.CompilerParams(
            dimension_semantics=("parallel", "arbitrary"),
            vmem_limit_bytes=vmem_limit),
        cost_estimate=cost,
    )(x_bf, w_bf, x2_p, w2_p, b_p)

    return out[:B, :num_classes]


def _svm_reference(x_nchw, weights, bias, kernel_type, gamma, r, degree):
    """Pure-JAX f32 reference (mirrors the PyTorch classifiers)."""
    xf = x_nchw.reshape(x_nchw.shape[0], -1).astype(jnp.float32)
    w = weights.astype(jnp.float32)
    b = bias.astype(jnp.float32)
    xwT = xf @ w.T
    if kernel_type == "linear":
        return xwT + b
    if kernel_type in ("poly", "sigmoid"):
        return (gamma * xwT + r) ** degree + b
    d2 = jnp.maximum(jnp.sum(xf * xf, -1, keepdims=True)
                     + jnp.sum(w * w, -1)[None, :] - 2.0 * xwT, 0.0)
    dists = jnp.sqrt(d2)
    if kernel_type == "custom":
        return (gamma * dists + r) ** degree + b
    mean = jnp.mean(dists)
    std = jnp.std(dists, ddof=1)           # torch.std (unbiased)
    dn = (dists - mean) / std
    return jnp.exp(-gamma * dn * dn) + b


if __name__ == "__main__":
    # Config (feature_extractor = None branch of SVM_Model)
    B, image_C, image_H, image_W = 2, 4, 16, 16
    num_classes = 10
    gamma, r, degree = 0.5, 1.0, 3
    D = image_C * image_H * image_W

    key = jax.random.PRNGKey(0)
    kx, kw = jax.random.split(key)
    x = jax.random.normal(kx, (B, image_C, image_H, image_W), dtype=jnp.float32)
    weights = jax.random.normal(kw, (num_classes, D), dtype=jnp.float32)  # torch.randn init
    bias = jnp.zeros((num_classes,), dtype=jnp.float32)                    # torch.zeros init

    for ktype in ("linear", "poly", "sigmoid", "rbf", "custom"):
        out = svm_model_forward(
            x, weights, bias, kernel_type=ktype, gamma=gamma, r=r, degree=degree)
        out = jax.block_until_ready(out)
        ref = _svm_reference(x, weights, bias, ktype, gamma, r, degree)
        assert out.shape == (B, num_classes), (ktype, out.shape)
        assert bool(jnp.all(jnp.isfinite(out))), ktype
        # bf16 MXU operands with f32 accumulation -> loose tolerance.
        assert bool(jnp.allclose(out, ref, rtol=0.25, atol=1.0)), (
            ktype, float(jnp.max(jnp.abs(out - ref))))

    # TODO(synk): FeatureExtractor (model_extract_name != None) path is not in
    # the provided source; only the flatten-classifier branch is implemented.
    # TODO(synk): the reference's 'sigmoid' branch constructs PolySVM without
    # `degree` (TypeError in torch); we treat it as the poly formula here.
    print("KERNEL_OK")
</pallas_src>

<mosaic_0001>
module attributes {stable_mosaic.version = 11 : i64} {
  func.func @kernel(%arg0: i32, %arg1: i32, %arg2: memref<8x512xbf16, #tpu.memory_space<vmem>>, %arg3: memref<128x512xbf16, #tpu.memory_space<vmem>>, %arg4: memref<8x1xf32, #tpu.memory_space<vmem>>, %arg5: memref<1x128xf32, #tpu.memory_space<vmem>>, %arg6: memref<1x128xf32, #tpu.memory_space<vmem>>, %arg7: memref<8x128xf32, #tpu.memory_space<vmem>>, %arg8: memref<8x128xf32, #tpu.memory_space<vmem>>) attributes {dimension_semantics = [#tpu.dimension_semantics<parallel>, #tpu.dimension_semantics<arbitrary>], iteration_bounds = array<i64: 1, 2>, scalar_prefetch = 0 : i64, scratch_operands = 1 : i64, tpu.core_type = #tpu.core_type<tc>, window_params = [{transform_indices = @transform_0, window_bounds = array<i64: 8, 512>}, {transform_indices = @transform_1, window_bounds = array<i64: 128, 512>}, {transform_indices = @transform_2, window_bounds = array<i64: 8, 1>}, {pipeline_mode = #tpu.pipeline_mode<synchronous>, transform_indices = @transform_3, window_bounds = array<i64: 1, 128>}, {pipeline_mode = #tpu.pipeline_mode<synchronous>, transform_indices = @transform_4, window_bounds = array<i64: 1, 128>}, {transform_indices = @transform_5, window_bounds = array<i64: 8, 128>}]} {
    %c0_i32 = arith.constant 0 : i32
    %0 = arith.cmpi eq, %arg1, %c0_i32 : i32
    %1 = arith.extui %0 : i1 to i32
    %c0_i32_0 = arith.constant 0 : i32
    %2 = arith.cmpi ne, %1, %c0_i32_0 : i32
    scf.if %2 {
      %cst_9 = arith.constant 0.000000e+00 : f32
      %12 = vector.broadcast %cst_9 : f32 to vector<8x128xf32>
      %c0_10 = arith.constant 0 : index
      %c0_11 = arith.constant 0 : index
      %13 = vector.load %arg8[%c0_10, %c0_11] : memref<8x128xf32, #tpu.memory_space<vmem>>, vector<8x128xf32>
      tpu.vector_store %arg8[%c0_10, %c0_11], %12 {strides = array<i32>} : memref<8x128xf32, #tpu.memory_space<vmem>>, vector<8x128xf32>,
    } else {
    }
    %c0 = arith.constant 0 : index
    %c0_1 = arith.constant 0 : index
    %3 = vector.load %arg8[%c0, %c0_1] : memref<8x128xf32, #tpu.memory_space<vmem>>, vector<8x128xf32>
    %c0_2 = arith.constant 0 : index
    %c0_3 = arith.constant 0 : index
    %4 = vector.load %arg2[%c0_2, %c0_3] : memref<8x512xbf16, #tpu.memory_space<vmem>>, vector<8x512xbf16>
    %c0_4 = arith.constant 0 : index
    %c0_5 = arith.constant 0 : index
    %5 = vector.load %arg3[%c0_4, %c0_5] : memref<128x512xbf16, #tpu.memory_space<vmem>>, vector<128x512xbf16>
    %cst = arith.constant dense<0.000000e+00> : vector<8x128xf32>
    %6 = tpu.matmul %4, %5, %cst {dimension_numbers = #tpu.dot_dimension_numbers<[1], [1], [0], [0], [0, 0, 1, 0], [], []>} : vector<8x512xbf16>, vector<128x512xbf16>, vector<8x128xf32> -> vector<8x128xf32>
    %7 = arith.addf %3, %6 : vector<8x128xf32>
    %c0_6 = arith.constant 0 : index
    %c0_7 = arith.constant 0 : index
    %8 = vector.load %arg8[%c0_6, %c0_7] : memref<8x128xf32, #tpu.memory_space<vmem>>, vector<8x128xf32>
    tpu.vector_store %arg8[%c0_6, %c0_7], %7 {strides = array<i32>} : memref<8x128xf32, #tpu.memory_space<vmem>>, vector<8x128xf32>,
    %c1_i32 = arith.constant 1 : i32
    %9 = arith.cmpi eq, %arg1, %c1_i32 : i32
    %10 = arith.extui %9 : i1 to i32
    %c0_i32_8 = arith.constant 0 : i32
    %11 = arith.cmpi ne, %10, %c0_i32_8 : i32
    scf.if %11 {
      %c0_9 = arith.constant 0 : index
      %c0_10 = arith.constant 0 : index
      %12 = vector.load %arg8[%c0_9, %c0_10] : memref<8x128xf32, #tpu.memory_space<vmem>>, vector<8x128xf32>
      %c0_11 = arith.constant 0 : index
      %c0_12 = arith.constant 0 : index
      %13 = vector.load %arg6[%c0_11, %c0_12] : memref<1x128xf32, #tpu.memory_space<vmem>>, vector<1x128xf32>
      %14 = vector.broadcast %13 : vector<1x128xf32> to vector<8x128xf32>
      %15 = arith.addf %12, %14 : vector<8x128xf32>
      %c0_13 = arith.constant 0 : index
      %c0_14 = arith.constant 0 : index
      %16 = vector.load %arg7[%c0_13, %c0_14] : memref<8x128xf32, #tpu.memory_space<vmem>>, vector<8x128xf32>
      tpu.vector_store %arg7[%c0_13, %c0_14], %15 {strides = array<i32>} : memref<8x128xf32, #tpu.memory_space<vmem>>, vector<8x128xf32>,
    } else {
    }
    return
  }
  func.func @transform_0(%arg0: i32, %arg1: i32) -> (i32, i32) {
    %c0_i32 = arith.constant 0 : i32
    return %arg0, %arg1 : i32, i32
  }
  func.func @transform_1(%arg0: i32, %arg1: i32) -> (i32, i32) {
    %c0_i32 = arith.constant 0 : i32
    %c0_i32_0 = arith.constant 0 : i32
    return %c0_i32, %arg1 : i32, i32
  }
  func.func @transform_2(%arg0: i32, %arg1: i32) -> (i32, i32) {
    %c0_i32 = arith.constant 0 : i32
    %c0_i32_0 = arith.constant 0 : i32
    return %arg0, %c0_i32 : i32, i32
  }
  func.func @transform_3(%arg0: i32, %arg1: i32) -> (i32, i32) {
    %c0_i32 = arith.constant 0 : i32
    %c0_i32_0 = arith.constant 0 : i32
    %c0_i32_1 = arith.constant 0 : i32
    return %c0_i32, %c0_i32_0 : i32, i32
  }
  func.func @transform_4(%arg0: i32, %arg1: i32) -> (i32, i32) {
    %c0_i32 = arith.constant 0 : i32
    %c0_i32_0 = arith.constant 0 : i32
    %c0_i32_1 = arith.constant 0 : i32
    return %c0_i32, %c0_i32_0 : i32, i32
  }
  func.func @transform_5(%arg0: i32, %arg1: i32) -> (i32, i32) {
    %c0_i32 = arith.constant 0 : i32
    %c0_i32_0 = arith.constant 0 : i32
    return %arg0, %c0_i32 : i32, i32
  }
}

</mosaic_0001>

<llo_original>
// kernel: svm_model_forward.1
$region0: #{svm_model_forward.1}
  #allocation0 [shape = 'u32[]', space=smem, size = 0x4, offset = 0x4, fixed_abs, tag = 'smem constant byte address 0x4 - core index']
  #allocation1 [shape = 'u32[144,128]{1,0:T(1,128)}', space=vmem, size = 0x12000, scoped, tag = 'internal scratch']
  #allocation2 [shape = 'f32[8,128]{1,0:T(8,128)}', space=vmem, size = 0x1000, scoped, tag = 'scratch operand']
  %s0 = inlined_call_operand.vmem [shape: bf16[8,1024], index: 0, kind: input, shape index: {}]
  %s1 = inlined_call_operand.vmem [shape: bf16[128,1024], index: 1, kind: input, shape index: {}]
  %s2 = inlined_call_operand.vmem [shape: f32[8,1], index: 2, kind: input, shape index: {}]
  %s3 = inlined_call_operand.vmem [shape: f32[1,128], index: 3, kind: input, shape index: {}]
  %s4 = inlined_call_operand.vmem [shape: f32[1,128], index: 4, kind: input, shape index: {}]
  %s5 = inlined_call_operand.vmem [shape: f32[8,128], index: 5, kind: output, shape index: {}]
  %s6 = sld [smem:[#allocation0]]
  $region84: #{svm_model_forward.1} parent=0
    _
  %s8 = ssub.s32 1, %s6
  %s9 = scalar_select 0, %s8, %s6
  $region1: #{svm_model_forward.1} parent=0
    #allocation3 [shape = 'u8[262144]{0}', space=vmem, size = 0x40000, scoped, tag = 'input window, operand 1']
    loop: start=0, step=1, limit=4
    $region2: #{svm_model_forward.1} parent=1 // loop_pre_header
      _
    $region3: #{svm_model_forward.1} parent=1 // loop_header
      %s11 = sphi 0, %s15
      %p12 = scmp.ge.s32.totalorder %s11, 4
      %s18 = sphi 0, %s30
      %s19 = sphi 0, %s26
      %s20 = sphi 0, %s18
      %s21 = sphi 0, %s19
      %s22 = sphi 0, %s20
      %s23 = sphi 0, %s21
      %s35 = sphi 0, %s37
      %s38 = sphi 0, %s35
      %s39 = sphi 0, %s38
      %s55 = sphi 0, %s39
      %s61 = sphi 0, %s63
      %s64 = sphi 0, %s61
      %s65 = sphi 0, %s64
      %s81 = sphi 0, %s65
      %s87 = sphi 0, %s89
      %s90 = sphi 0, %s87
      %s91 = sphi 0, %s90
      %s107 = sphi 0, %s91
      %s111 = sphi 0, %s111
      %s113 = sphi 0, %s111
      %s114 = sphi 0, %s113
      %s128 = sphi 0, %s114
      %s132 = sphi 0, %s132
      %s134 = sphi 0, %s132
      %s135 = sphi 0, %s134
      %s149 = sphi 0, %s135
      %s155 = sphi 0, %s157
      %s158 = sphi 0, %s155
      %s159 = sphi 0, %s158
      %s175 = sphi 0, %s159
    $region4: #{svm_model_forward.1} parent=1 // loop_header_branch
      %14 = sbr.rel (%p12) target = $region8
    $region5: #{svm_model_forward.1} parent=1 // loop_body
      %s16 = ssub.s32 %s11, 1
      %s17 = ssub.s32 %s11, 2
      %s24 = sadd.s32 1, %s19
      %p25 = scmp.ge.s32.totalorder %s24, 2
      %s26 = scalar_select %p25, 0, %s24
      %s27 = sadd.s32 1, %s18
      %s28 = scalar_select %p25, %s27, %s18
      %p29 = scmp.ge.s32.totalorder %s28, 1
      %s30 = scalar_select %p29, 0, %s28
      %s31 = ssub.s32 %s18, %s30
      %s32 = ssub.s32 %s19, %s26
      %s33 = sor.u32 %s31, %s32
      %p34 = scmp.eq.s32.totalorder %s33, 0
      %s36 = sadd.s32 %s35, 1
      %s37 = scalar_select %p34, %s35, %s36
      %p40 = pneg %p34
      %p41 = scmp.eq.s32.totalorder %s11, 1
      %p42 = por %p40, %p41
      %p43 = scmp.ne.s32.totalorder %s35, %s38
      %p44 = scmp.eq.s32.totalorder %s11, 0
      %p45 = por %p43, %p44
      %p46 = scmp.ne.s32.totalorder %s35, %s38
      %p47 = scmp.eq.s32.totalorder %s16, 1
      %p48 = por %p46, %p47
      %p49 = scmp.ne.s32.totalorder %s38, %s39
      %p50 = scmp.eq.s32.totalorder %s16, 0
      %p51 = por %p49, %p50
      %p52 = scmp.ne.s32.totalorder %s38, %s39
      %p53 = scmp.eq.s32.totalorder %s17, 1
      %p54 = por %p52, %p53
      %p56 = scmp.ne.s32.totalorder %s39, %s55
      %p57 = scmp.eq.s32.totalorder %s17, 0
      %p58 = por %p56, %p57
      %s59 = ssub.s32 %s19, %s26
      %p60 = scmp.eq.s32.totalorder %s59, 0
      %s62 = sadd.s32 %s61, 1
      %s63 = scalar_select %p60, %s61, %s62
      %p66 = pneg %p60
      %p67 = scmp.eq.s32.totalorder %s11, 1
      %p68 = por %p66, %p67
      %p69 = scmp.ne.s32.totalorder %s61, %s64
      %p70 = scmp.eq.s32.totalorder %s11, 0
      %p71 = por %p69, %p70
      %p72 = scmp.ne.s32.totalorder %s61, %s64
      %p73 = scmp.eq.s32.totalorder %s16, 1
      %p74 = por %p72, %p73
      %p75 = scmp.ne.s32.totalorder %s64, %s65
      %p76 = scmp.eq.s32.totalorder %s16, 0
      %p77 = por %p75, %p76
      %p78 = scmp.ne.s32.totalorder %s64, %s65
      %p79 = scmp.eq.s32.totalorder %s17, 1
      %p80 = por %p78, %p79
      %p82 = scmp.ne.s32.totalorder %s65, %s81
      %p83 = scmp.eq.s32.totalorder %s17, 0
      %p84 = por %p82, %p83
      %s85 = ssub.s32 %s18, %s30
      %p86 = scmp.eq.s32.totalorder %s85, 0
      %s88 = sadd.s32 %s87, 1
      %s89 = scalar_select %p86, %s87, %s88
      %p92 = pneg %p86
      %p93 = scmp.eq.s32.totalorder %s11, 1
      %p94 = por %p92, %p93
      %p95 = scmp.ne.s32.totalorder %s87, %s90
      %p96 = scmp.eq.s32.totalorder %s11, 0
      %p97 = por %p95, %p96
      %p98 = scmp.ne.s32.totalorder %s87, %s90
      %p99 = scmp.eq.s32.totalorder %s16, 1
      %p100 = por %p98, %p99
      %p101 = scmp.ne.s32.totalorder %s90, %s91
      %p102 = scmp.eq.s32.totalorder %s16, 0
      %p103 = por %p101, %p102
      %p104 = scmp.ne.s32.totalorder %s90, %s91
      %p105 = scmp.eq.s32.totalorder %s17, 1
      %p106 = por %p104, %p105
      %p108 = scmp.ne.s32.totalorder %s91, %s107
      %p109 = scmp.eq.s32.totalorder %s17, 0
      %p110 = por %p108, %p109
      %s112 = sadd.s32 %s111, 1
      %p115 = scmp.eq.s32.totalorder %s11, 1
      %p116 = scmp.ne.s32.totalorder %s111, %s113
      %p117 = scmp.eq.s32.totalorder %s11, 0
      %p118 = por %p116, %p117
      %p119 = scmp.ne.s32.totalorder %s111, %s113
      %p120 = scmp.eq.s32.totalorder %s16, 1
      %p121 = por %p119, %p120
      %p122 = scmp.ne.s32.totalorder %s113, %s114
      %p123 = scmp.eq.s32.totalorder %s16, 0
      %p124 = por %p122, %p123
      %p125 = scmp.ne.s32.totalorder %s113, %s114
      %p126 = scmp.eq.s32.totalorder %s17, 1
      %p127 = por %p125, %p126
      %p129 = scmp.ne.s32.totalorder %s114, %s128
      %p130 = scmp.eq.s32.totalorder %s17, 0
      %p131 = por %p129, %p130
      %s133 = sadd.s32 %s132, 1
      %p136 = scmp.eq.s32.totalorder %s11, 1
      %p137 = scmp.ne.s32.totalorder %s132, %s134
      %p138 = scmp.eq.s32.totalorder %s11, 0
      %p139 = por %p137, %p138
      %p140 = scmp.ne.s32.totalorder %s132, %s134
      %p141 = scmp.eq.s32.totalorder %s16, 1
      %p142 = por %p140, %p141
      %p143 = scmp.ne.s32.totalorder %s134, %s135
      %p144 = scmp.eq.s32.totalorder %s16, 0
      %p145 = por %p143, %p144
      %p146 = scmp.ne.s32.totalorder %s134, %s135
      %p147 = scmp.eq.s32.totalorder %s17, 1
      %p148 = por %p146, %p147
      %p150 = scmp.ne.s32.totalorder %s135, %s149
      %p151 = scmp.eq.s32.totalorder %s17, 0
      %p152 = por %p150, %p151
      %s153 = ssub.s32 %s18, %s30
      %p154 = scmp.eq.s32.totalorder %s153, 0
      %s156 = sadd.s32 %s155, 1
      %s157 = scalar_select %p154, %s155, %s156
      %p160 = pneg %p154
      %p161 = scmp.eq.s32.totalorder %s11, 1
      %p162 = por %p160, %p161
      %p163 = scmp.ne.s32.totalorder %s155, %s158
      %p164 = scmp.eq.s32.totalorder %s11, 0
      %p165 = por %p163, %p164
      %p166 = scmp.ne.s32.totalorder %s155, %s158
      %p167 = scmp.eq.s32.totalorder %s16, 1
      %p168 = por %p166, %p167
      %p169 = scmp.ne.s32.totalorder %s158, %s159
      %p170 = scmp.eq.s32.totalorder %s16, 0
      %p171 = por %p169, %p170
      %p172 = scmp.ne.s32.totalorder %s158, %s159
      %p173 = scmp.eq.s32.totalorder %s17, 1
      %p174 = por %p172, %p173
      %p176 = scmp.ne.s32.totalorder %s159, %s175
      %p177 = scmp.eq.s32.totalorder %s17, 0
      %p178 = por %p176, %p177
      %p179 = scmp.le.s32.totalorder 1, %s11
      %p180 = scmp.lt.s32.totalorder %s11, 3
      %p181 = pnand %p179, %p180
      %p182 = pneg %p181
      // Predicated region
      $region9: #{svm_model_forward.1} parent=5 // pred_check
        _
      $region10: #{svm_model_forward.1} parent=5 // pred_check_branch
        %184 = sbr.rel (%p181) target = $region12
      $region11: #{svm_model_forward.1} parent=5 // pred_region
        %s185 = ssub.s32 %s11, 1
        // Predicated region
        $region13: #{svm_model_forward.1} parent=11 // pred_check
          %p186 = pneg %p103
        $region14: #{svm_model_forward.1} parent=11 // pred_check_branch
          %188 = sbr.rel (%p186) target = $region16
        $region15: #{svm_model_forward.1} parent=11 // pred_region
          %p189 = scmp.lt.s32.totalorder %s20, 0
          %s190 = scalar_select %p189, %s20, 0
          %s191 = smul.addr %s190, 8
          %s192 = scalar_lea.vmem %s2, %s191
        $region16: #{svm_model_forward.1} parent=11 // pred_fallthru
          _
        // Predicated region
        $region17: #{svm_model_forward.1} parent=11 // pred_check
          %p193 = pneg %p124
        $region18: #{svm_model_forward.1} parent=11 // pred_check_branch
          %195 = sbr.rel (%p193) target = $region20
        $region19: #{svm_model_forward.1} parent=11 // pred_region
          _
        $region20: #{svm_model_forward.1} parent=11 // pred_fallthru
          _
        // Predicated region
        $region21: #{svm_model_forward.1} parent=11 // pred_check
          %p196 = pneg %p145
        $region22: #{svm_model_forward.1} parent=11 // pred_check_branch
          %198 = sbr.rel (%p196) target = $region24
        $region23: #{svm_model_forward.1} parent=11 // pred_region
          _
        $region24: #{svm_model_forward.1} parent=11 // pred_fallthru
          _
      $region12: #{svm_model_forward.1} parent=5 // pred_fallthru
        _
      %p199 = scmp.lt.s32.totalorder %s11, 2
      // Predicated region
      $region25: #{svm_model_forward.1} parent=5 // pred_check
        %p200 = pneg %p199
      $region26: #{svm_model_forward.1} parent=5 // pred_check_branch
        %202 = sbr.rel (%p200) target = $region28
      $region27: #{svm_model_forward.1} parent=5 // pred_region
        // Predicated region
        $region29: #{svm_model_forward.1} parent=27 // pred_check
          %p203 = pneg %p45
        $region30: #{svm_model_forward.1} parent=27 // pred_check_branch
          %205 = sbr.rel (%p203) target = $region32
        $region31: #{svm_model_forward.1} parent=27 // pred_region
          %s206 = smul.u32 4, %s19
          %p207 = scmp.lt.s32.totalorder %s18, 0
          %s208 = scalar_select %p207, %s18, 0
          %p209 = scmp.lt.s32.totalorder %s206, 7
          %s210 = scalar_select %p209, %s206, 7
          %s211 = smul.addr %s208, 8
          %s212 = sadd.s32 %s210, %s211
          %s213 = smul.addr %s212, 4
          %s214 = scalar_lea.vmem %s0, %s213
          %s215 = smul.u32 4, %s19
        $region32: #{svm_model_forward.1} parent=27 // pred_fallthru
          _
        // Predicated region
        $region33: #{svm_model_forward.1} parent=27 // pred_check
          %p216 = pneg %p71
        $region34: #{svm_model_forward.1} parent=27 // pred_check_branch
          %218 = sbr.rel (%p216) target = $region36
        $region35: #{svm_model_forward.1} parent=27 // pred_region
          %s219 = sand.u32 %s61, 1
          %s220 = sand.u32 %s61, 1
          %s221 = smul.addr %s220, 256
          %s222 = scalar_lea.vmem [#allocation3], %s221
          %s223 = smul.u32 4, %s19
          %s224 = smul.addr %s223, 4
          %s225 = scalar_lea.vmem %s1, %s224
          // Predicated region
          $region37: #{svm_model_forward.1} parent=35 // pred_check
            _
          $region38: #{svm_model_forward.1} parent=35 // pred_check_branch
            %227 = sbr.rel (0) target = $region40
          $region39: #{svm_model_forward.1} parent=35 // pred_region
            // Predicated region
            $region41: #{svm_model_forward.1} parent=39 // pred_check
              _
            $region42: #{svm_model_forward.1} parent=39 // pred_check_branch
              %229 = sbr.rel (0) target = $region44
            $region43: #{svm_model_forward.1} parent=39 // pred_region
              loop: start=0, step=1, limit=1
              $region45: #{svm_model_forward.1} parent=43 // loop_pre_header
                _
              $region46: #{svm_model_forward.1} parent=43 // loop_header
                %s231 = sphi 0, %s235
                %p232 = scmp.ge.s32.totalorder %s231, 1
                %s236 = sphi %s225, %s225
                %s237 = sphi %s222, %s222
              $region47: #{svm_model_forward.1} parent=43 // loop_header_branch
                %234 = sbr.rel (%p232) target = $region51
              $region48: #{svm_model_forward.1} parent=43 // loop_body
                %v238 = vld [vmem:[%s236] sm:$0xff]
                %239 = vst [vmem:[%s237] sm:$0xff] %v238
                %v240 = vld [vmem:[%s236 + $0x8] sm:$0xff]
                %241 = vst [vmem:[%s237 + $0x8] sm:$0xff] %v240
                %v242 = vld [vmem:[%s236 + $0x20] sm:$0xff]
                %243 = vst [vmem:[%s237 + $0x10] sm:$0xff] %v242
                %v244 = vld [vmem:[%s236 + $0x28] sm:$0xff]
                %245 = vst [vmem:[%s237 + $0x18] sm:$0xff] %v244
                %v246 = vld [vmem:[%s236 + $0x40] sm:$0xff]
                %247 = vst [vmem:[%s237 + $0x20] sm:$0xff] %v246
                %v248 = vld [vmem:[%s236 + $0x48] sm:$0xff]
                %249 = vst [vmem:[%s237 + $0x28] sm:$0xff] %v248
                %v250 = vld [vmem:[%s236 + $0x60] sm:$0xff]
                %251 = vst [vmem:[%s237 + $0x30] sm:$0xff] %v250
                %v252 = vld [vmem:[%s236 + $0x68] sm:$0xff]
                %253 = vst [vmem:[%s237 + $0x38] sm:$0xff] %v252
                %v254 = vld [vmem:[%s236 + $0x80] sm:$0xff]
                %255 = vst [vmem:[%s237 + $0x40] sm:$0xff] %v254
                %v256 = vld [vmem:[%s236 + $0x88] sm:$0xff]
                %257 = vst [vmem:[%s237 + $0x48] sm:$0xff] %v256
                %v258 = vld [vmem:[%s236 + $0xa0] sm:$0xff]
                %259 = vst [vmem:[%s237 + $0x50] sm:$0xff] %v258
                %v260 = vld [vmem:[%s236 + $0xa8] sm:$0xff]
                %261 = vst [vmem:[%s237 + $0x58] sm:$0xff] %v260
                %v262 = vld [vmem:[%s236 + $0xc0] sm:$0xff]
                %263 = vst [vmem:[%s237 + $0x60] sm:$0xff] %v262
                %v264 = vld [vmem:[%s236 + $0xc8] sm:$0xff]
                %265 = vst [vmem:[%s237 + $0x68] sm:$0xff] %v264
                %v266 = vld [vmem:[%s236 + $0xe0] sm:$0xff]
                %267 = vst [vmem:[%s237 + $0x70] sm:$0xff] %v266
                %v268 = vld [vmem:[%s236 + $0xe8] sm:$0xff]
                %269 = vst [vmem:[%s237 + $0x78] sm:$0xff] %v268
                %v270 = vld [vmem:[%s236 + $0x100] sm:$0xff]
                %271 = vst [vmem:[%s237 + $0x80] sm:$0xff] %v270
                %v272 = vld [vmem:[%s236 + $0x108] sm:$0xff]
                %273 = vst [vmem:[%s237 + $0x88] sm:$0xff] %v272
                %v274 = vld [vmem:[%s236 + $0x120] sm:$0xff]
                %275 = vst [vmem:[%s237 + $0x90] sm:$0xff] %v274
                %v276 = vld [vmem:[%s236 + $0x128] sm:$0xff]
                %277 = vst [vmem:[%s237 + $0x98] sm:$0xff] %v276
                %v278 = vld [vmem:[%s236 + $0x140] sm:$0xff]
                %279 = vst [vmem:[%s237 + $0xa0] sm:$0xff] %v278
                %v280 = vld [vmem:[%s236 + $0x148] sm:$0xff]
                %281 = vst [vmem:[%s237 + $0xa8] sm:$0xff] %v280
                %v282 = vld [vmem:[%s236 + $0x160] sm:$0xff]
                %283 = vst [vmem:[%s237 + $0xb0] sm:$0xff] %v282
                %v284 = vld [vmem:[%s236 + $0x168] sm:$0xff]
                %285 = vst [vmem:[%s237 + $0xb8] sm:$0xff] %v284
                %v286 = vld [vmem:[%s236 + $0x180] sm:$0xff]
                %287 = vst [vmem:[%s237 + $0xc0] sm:$0xff] %v286
                %v288 = vld [vmem:[%s236 + $0x188] sm:$0xff]
                %289 = vst [vmem:[%s237 + $0xc8] sm:$0xff] %v288
                %v290 = vld [vmem:[%s236 + $0x1a0] sm:$0xff]
                %291 = vst [vmem:[%s237 + $0xd0] sm:$0xff] %v290
                %v292 = vld [vmem:[%s236 + $0x1a8] sm:$0xff]
                %293 = vst [vmem:[%s237 + $0xd8] sm:$0xff] %v292
                %v294 = vld [vmem:[%s236 + $0x1c0] sm:$0xff]
                %295 = vst [vmem:[%s237 + $0xe0] sm:$0xff] %v294
                %v296 = vld [vmem:[%s236 + $0x1c8] sm:$0xff]
                %297 = vst [vmem:[%s237 + $0xe8] sm:$0xff] %v296
                %v298 = vld [vmem:[%s236 + $0x1e0] sm:$0xff]
                %299 = vst [vmem:[%s237 + $0xf0] sm:$0xff] %v298
                %v300 = vld [vmem:[%s236 + $0x1e8] sm:$0xff]
                %301 = vst [vmem:[%s237 + $0xf8] sm:$0xff] %v300
              $region49: #{svm_model_forward.1} parent=43 // loop_footer
                %s235 = sadd.s32 1, %s231
              $region50: #{svm_model_forward.1} parent=43 // loop_footer_branch
                %230 = sbr.rel target = $region46
              $region51: #{svm_model_forward.1} parent=43 // loop_exit
                _
            $region44: #{svm_model_forward.1} parent=39 // pred_fallthru
              _
            // Predicated region
            $region52: #{svm_model_forward.1} parent=39 // pred_check
              _
            $region53: #{svm_model_forward.1} parent=39 // pred_check_branch
              %303 = sbr.rel target = $region55
            $region54: #{svm_model_forward.1} parent=39 // pred_region
              _
            $region55: #{svm_model_forward.1} parent=39 // pred_fallthru
              _
          $region40: #{svm_model_forward.1} parent=35 // pred_fallthru
            _
          %304 = vnop
        $region36: #{svm_model_forward.1} parent=27 // pred_fallthru
          _
      $region28: #{svm_model_forward.1} parent=5 // pred_fallthru
        _
      %p305 = scmp.le.s32.totalorder 1, %s11
      %p306 = scmp.lt.s32.totalorder %s11, 3
      %p307 = pnand %p305, %p306
      %p308 = pneg %p307
      // Predicated region
      $region56: #{svm_model_forward.1} parent=5 // pred_check
        _
      $region57: #{svm_model_forward.1} parent=5 // pred_check_branch
        %310 = sbr.rel (%p307) target = $region59
      $region58: #{svm_model_forward.1} parent=5 // pred_region
        %s311 = ssub.s32 %s11, 1
        %s312 = sand.u32 %s64, 1
        %s313 = sand.u32 %s64, 1
        %s314 = smul.addr %s313, 256
        %s315 = scalar_lea.vmem [#allocation3], %s314
        // Predicated region
        $region60: #{svm_model_forward.1} parent=58 // pred_check
          %p316 = pneg %p77
        $region61: #{svm_model_forward.1} parent=58 // pred_check_branch
          %318 = sbr.rel (%p316) target = $region63
        $region62: #{svm_model_forward.1} parent=58 // pred_region
          _
        $region63: #{svm_model_forward.1} parent=58 // pred_fallthru
          _
        %s319 = smul.u32 4, %s21
        %p320 = scmp.lt.s32.totalorder %s20, 0
        %s321 = scalar_select %p320, %s20, 0
        %p322 = scmp.lt.s32.totalorder %s319, 7
        %s323 = scalar_select %p322, %s319, 7
        %s324 = smul.addr %s321, 8
        %s325 = sadd.s32 %s323, %s324
        %s326 = smul.addr %s325, 4
        %s327 = scalar_lea.vmem %s0, %s326
        %p328 = pneg %p51
        %p329 = pneg %p48
        %s330 = sand.u32 %s64, 1
        %s331 = sand.u32 %s64, 1
        %s332 = smul.addr %s331, 256
        %s333 = scalar_lea.vmem [#allocation3], %s332
        %p334 = pneg %p77
        %p335 = pneg %p74
        %p336 = scmp.lt.s32.totalorder %s20, 0
        %s337 = scalar_select %p336, %s20, 0
        %s338 = smul.addr %s337, 8
        %s339 = scalar_lea.vmem %s2, %s338
        %p340 = pneg %p103
        %p341 = pneg %p100
        %p342 = pneg %p124
        %p343 = pneg %p121
        %p344 = pneg %p145
        %p345 = pneg %p142
        %p346 = pneg %p171
        %p347 = pneg %p168
        %p348 = scmp.lt.s32.totalorder %s20, 0
        %s349 = scalar_select %p348, %s20, 0
        %s350 = smul.addr %s349, 8
        %s351 = scalar_lea.vmem %s5, %s350
        %s352 = smul.u32 4, %s21
        %p353 = scmp.lt.s32.totalorder %s20, 0
        %s354 = scalar_select %p353, %s20, 0
        %p355 = scmp.lt.s32.totalorder %s352, 7
        %s356 = scalar_select %p355, %s352, 7
        %s357 = smul.addr %s354, 8
        %s358 = sadd.s32 %s356, %s357
        %s359 = smul.addr %s358, 4
        %s360 = scalar_lea.vmem %s0, %s359
        %s361 = smul.u32 4, %s21
        %s362 = smul.u32 4, %s21
        %p363 = scmp.lt.s32.totalorder %s20, 0
        %s364 = scalar_select %p363, %s20, 0
        %s365 = smul.addr %s364, 8
        %s366 = scalar_lea.vmem %s2, %s365
        %p367 = scmp.lt.s32.totalorder %s20, 0
        %s368 = scalar_select %p367, %s20, 0
        %s369 = smul.addr %s368, 8
        %s370 = scalar_lea.vmem %s5, %s369
        %p372 = scmp.eq.s32.totalorder %s21, 0
        // Predicated region
        $region64: #{svm_model_forward.1} parent=58 // pred_check
          %p373 = pneg %p372
        $region65: #{svm_model_forward.1} parent=58 // pred_check_branch
          %375 = sbr.rel (%p373) target = $region67
        $region66: #{svm_model_forward.1} parent=58 // pred_region
          %376 = vst [vmem:[#allocation2] sm:$0xff] 0.0
        $region67: #{svm_model_forward.1} parent=58 // pred_fallthru
          _
        %v377 = vld [vmem:[#allocation2] sm:$0xff]
        %v378 = vld [vmem:[%s360] sm:$0xff]
        %v379 = vld [vmem:[%s360 + $0x8] sm:$0xff]
        %v380 = vld [vmem:[%s315] sm:$0xff]
        %v381 = vld [vmem:[%s315 + $0x8] sm:$0xff]
        %v382 = vld [vmem:[%s315 + $0x10] sm:$0xff]
        %v383 = vld [vmem:[%s315 + $0x18] sm:$0xff]
        %v384 = vld [vmem:[%s315 + $0x20] sm:$0xff]
        %v385 = vld [vmem:[%s315 + $0x28] sm:$0xff]
        %v386 = vld [vmem:[%s315 + $0x30] sm:$0xff]
        %v387 = vld [vmem:[%s315 + $0x38] sm:$0xff]
        %v388 = vld [vmem:[%s315 + $0x40] sm:$0xff]
        %v389 = vld [vmem:[%s315 + $0x48] sm:$0xff]
        %v390 = vld [vmem:[%s315 + $0x50] sm:$0xff]
        %v391 = vld [vmem:[%s315 + $0x58] sm:$0xff]
        %v392 = vld [vmem:[%s315 + $0x60] sm:$0xff]
        %v393 = vld [vmem:[%s315 + $0x68] sm:$0xff]
        %v394 = vld [vmem:[%s315 + $0x70] sm:$0xff]
        %v395 = vld [vmem:[%s315 + $0x78] sm:$0xff]
        %v396 = vld [vmem:[%s315 + $0x80] sm:$0xff]
        %v397 = vld [vmem:[%s315 + $0x88] sm:$0xff]
        %v398 = vld [vmem:[%s315 + $0x90] sm:$0xff]
        %v399 = vld [vmem:[%s315 + $0x98] sm:$0xff]
        %v400 = vld [vmem:[%s315 + $0xa0] sm:$0xff]
        %v401 = vld [vmem:[%s315 + $0xa8] sm:$0xff]
        %v402 = vld [vmem:[%s315 + $0xb0] sm:$0xff]
        %v403 = vld [vmem:[%s315 + $0xb8] sm:$0xff]
        %v404 = vld [vmem:[%s315 + $0xc0] sm:$0xff]
        %v405 = vld [vmem:[%s315 + $0xc8] sm:$0xff]
        %v406 = vld [vmem:[%s315 + $0xd0] sm:$0xff]
        %v407 = vld [vmem:[%s315 + $0xd8] sm:$0xff]
        %v408 = vld [vmem:[%s315 + $0xe0] sm:$0xff]
        %v409 = vld [vmem:[%s315 + $0xe8] sm:$0xff]
        %v410 = vld [vmem:[%s315 + $0xf0] sm:$0xff]
        %v411 = vld [vmem:[%s315 + $0xf8] sm:$0xff]
        %v414 = vunpack.c.l.b16 %v378
        %v415 = vunpack.c.h.b16 %v378
        %v416 = vunpack.c.l.b16 %v379
        %v417 = vunpack.c.h.b16 %v379
        %v418 = vpack.c.b16 %v414, %v414
        %v419 = vpack.c.b16 %v415, %v415
        %v420 = vpack.c.b16 %v416, %v416
        %v421 = vpack.c.b16 %v417, %v417
        %v458 = vunpack.c.l.b16 %v380
        %v459 = vunpack.c.h.b16 %v380
        %v460 = vunpack.c.l.b16 %v381
        %v461 = vunpack.c.h.b16 %v381
        %v462 = vunpack.c.l.b16 %v382
        %v463 = vunpack.c.h.b16 %v382
        %v464 = vunpack.c.l.b16 %v383
        %v465 = vunpack.c.h.b16 %v383
        %v466 = vunpack.c.l.b16 %v384
        %v467 = vunpack.c.h.b16 %v384
        %v468 = vunpack.c.l.b16 %v385
        %v469 = vunpack.c.h.b16 %v385
        %v470 = vunpack.c.l.b16 %v386
        %v471 = vunpack.c.h.b16 %v386
        %v472 = vunpack.c.l.b16 %v387
        %v473 = vunpack.c.h.b16 %v387
        %v474 = vunpack.c.l.b16 %v388
        %v475 = vunpack.c.h.b16 %v388
        %v476 = vunpack.c.l.b16 %v389
        %v477 = vunpack.c.h.b16 %v389
        %v478 = vunpack.c.l.b16 %v390
        %v479 = vunpack.c.h.b16 %v390
        %v480 = vunpack.c.l.b16 %v391
        %v481 = vunpack.c.h.b16 %v391
        %v482 = vunpack.c.l.b16 %v392
        %v483 = vunpack.c.h.b16 %v392
        %v484 = vunpack.c.l.b16 %v393
        %v485 = vunpack.c.h.b16 %v393
        %v486 = vunpack.c.l.b16 %v394
        %v487 = vunpack.c.h.b16 %v394
        %v488 = vunpack.c.l.b16 %v395
        %v489 = vunpack.c.h.b16 %v395
        %v490 = vunpack.c.l.b16 %v396
        %v491 = vunpack.c.h.b16 %v396
        %v492 = vunpack.c.l.b16 %v397
        %v493 = vunpack.c.h.b16 %v397
        %v494 = vunpack.c.l.b16 %v398
        %v495 = vunpack.c.h.b16 %v398
        %v496 = vunpack.c.l.b16 %v399
        %v497 = vunpack.c.h.b16 %v399
        %v498 = vunpack.c.l.b16 %v400
        %v499 = vunpack.c.h.b16 %v400
        %v500 = vunpack.c.l.b16 %v401
        %v501 = vunpack.c.h.b16 %v401
        %v502 = vunpack.c.l.b16 %v402
        %v503 = vunpack.c.h.b16 %v402
        %v504 = vunpack.c.l.b16 %v403
        %v505 = vunpack.c.h.b16 %v403
        %v506 = vunpack.c.l.b16 %v404
        %v507 = vunpack.c.h.b16 %v404
        %v508 = vunpack.c.l.b16 %v405
        %v509 = vunpack.c.h.b16 %v405
        %v510 = vunpack.c.l.b16 %v406
        %v511 = vunpack.c.h.b16 %v406
        %v512 = vunpack.c.l.b16 %v407
        %v513 = vunpack.c.h.b16 %v407
        %v514 = vunpack.c.l.b16 %v408
        %v515 = vunpack.c.h.b16 %v408
        %v516 = vunpack.c.l.b16 %v409
        %v517 = vunpack.c.h.b16 %v409
        %v518 = vunpack.c.l.b16 %v410
        %v519 = vunpack.c.h.b16 %v410
        %v520 = vunpack.c.l.b16 %v411
        %v521 = vunpack.c.h.b16 %v411
        %v522 = vpack.c.b16 %v462, %v458
        %v523 = vpack.c.b16 %v463, %v459
        %v524 = vpack.c.b16 %v464, %v460
        %v525 = vpack.c.b16 %v465, %v461
        %v526 = vpack.c.b16 %v470, %v466
        %v527 = vpack.c.b16 %v471, %v467
        %v528 = vpack.c.b16 %v472, %v468
        %v529 = vpack.c.b16 %v473, %v469
        %v530 = vpack.c.b16 %v478, %v474
        %v531 = vpack.c.b16 %v479, %v475
        %v532 = vpack.c.b16 %v480, %v476
        %v533 = vpack.c.b16 %v481, %v477
        %v534 = vpack.c.b16 %v486, %v482
        %v535 = vpack.c.b16 %v487, %v483
        %v536 = vpack.c.b16 %v488, %v484
        %v537 = vpack.c.b16 %v489, %v485
        %v538 = vpack.c.b16 %v494, %v490
        %v539 = vpack.c.b16 %v495, %v491
        %v540 = vpack.c.b16 %v496, %v492
        %v541 = vpack.c.b16 %v497, %v493
        %v542 = vpack.c.b16 %v502, %v498
        %v543 = vpack.c.b16 %v503, %v499
        %v544 = vpack.c.b16 %v504, %v500
        %v545 = vpack.c.b16 %v505, %v501
        %v546 = vpack.c.b16 %v510, %v506
        %v547 = vpack.c.b16 %v511, %v507
        %v548 = vpack.c.b16 %v512, %v508
        %v549 = vpack.c.b16 %v513, %v509
        %v550 = vpack.c.b16 %v518, %v514
        %v551 = vpack.c.b16 %v519, %v515
        %v552 = vpack.c.b16 %v520, %v516
        %v553 = vpack.c.b16 %v521, %v517
        %586 = vmatprep.subr.bf16.mxu0 %v551
        %587 = vmatpush1.bf16.xpose.msra.mxu0 %v550
        %588 = vmatprep.subr.bf16.mxu0 %v547
        %589 = vmatpush1.bf16.xpose.msra.mxu0 %v546
        %590 = vmatprep.subr.bf16.mxu0 %v543
        %591 = vmatpush1.bf16.xpose.msra.mxu0 %v542
        %592 = vmatprep.subr.bf16.mxu0 %v539
        %593 = vmatpush1.bf16.xpose.msra.mxu0 %v538
        %594 = vmatprep.subr.bf16.mxu0 %v535
        %595 = vmatpush1.bf16.xpose.msra.mxu0 %v534
        %596 = vmatprep.subr.bf16.mxu0 %v531
        %597 = vmatpush1.bf16.xpose.msra.mxu0 %v530
        %598 = vmatprep.subr.bf16.mxu0 %v527
        %599 = vmatpush1.bf16.xpose.msra.mxu0 %v526
        %600 = vmatprep.subr.bf16.mxu0 %v523
        %601 = vmatpush1.bf16.xpose.msra.mxu0 %v522
        %602 = vmatprep.subr.bf16.mxu0 0
        %603 = vmatpush2.bf16.xpose.msra.mxu0 0
        %604 = vmatprep.subr.bf16.mxu0 0
        %605 = vmatpush2.bf16.xpose.msra.mxu0 0
        %606 = vmatprep.subr.bf16.mxu0 0
        %607 = vmatpush2.bf16.xpose.msra.mxu0 0
        %608 = vmatprep.subr.bf16.mxu0 0
        %609 = vmatpush2.bf16.xpose.msra.mxu0 0
        %610 = vmatprep.subr.bf16.mxu0 0
        %611 = vmatpush2.bf16.xpose.msra.mxu0 0
        %612 = vmatprep.subr.bf16.mxu0 0
        %613 = vmatpush2.bf16.xpose.msra.mxu0 0
        %614 = vmatprep.subr.bf16.mxu0 0
        %615 = vmatpush2.bf16.xpose.msra.mxu0 0
        %616 = vmatprep.subr.bf16.mxu0 0
        %617 = vmatpush2.bf16.xpose.msra.mxu0 0
        %618 = vmatprep.mubr.bf16.mxu0 %v419
        %619 = vmatmul.mubr.bf16.gmra.mxu0 %v418
        %v620 = vpop.f32.mrf.mxu0
        %v621 = vadd.f32 0.0, %v620
        %v622 = vpop.f32.mrf.mxu0
        %v623 = vpop.f32.mrf.mxu0
        %v624 = vpop.f32.mrf.mxu0
        %625 = vdwg.mxu0
        %626 = vmatprep.subr.bf16.mxu0 %v553
        %627 = vmatpush1.bf16.xpose.msra.mxu0 %v552
        %628 = vmatprep.subr.bf16.mxu0 %v549
        %629 = vmatpush1.bf16.xpose.msra.mxu0 %v548
        %630 = vmatprep.subr.bf16.mxu0 %v545
        %631 = vmatpush1.bf16.xpose.msra.mxu0 %v544
        %632 = vmatprep.subr.bf16.mxu0 %v541
        %633 = vmatpush1.bf16.xpose.msra.mxu0 %v540
        %634 = vmatprep.subr.bf16.mxu0 %v537
        %635 = vmatpush1.bf16.xpose.msra.mxu0 %v536
        %636 = vmatprep.subr.bf16.mxu0 %v533
        %637 = vmatpush1.bf16.xpose.msra.mxu0 %v532
        %638 = vmatprep.subr.bf16.mxu0 %v529
        %639 = vmatpush1.bf16.xpose.msra.mxu0 %v528
        %640 = vmatprep.subr.bf16.mxu0 %v525
        %641 = vmatpush1.bf16.xpose.msra.mxu0 %v524
        %642 = vmatprep.subr.bf16.mxu0 0
        %643 = vmatpush2.bf16.xpose.msra.mxu0 0
        %644 = vmatprep.subr.bf16.mxu0 0
        %645 = vmatpush2.bf16.xpose.msra.mxu0 0
        %646 = vmatprep.subr.bf16.mxu0 0
        %647 = vmatpush2.bf16.xpose.msra.mxu0 0
        %648 = vmatprep.subr.bf16.mxu0 0
        %649 = vmatpush2.bf16.xpose.msra.mxu0 0
        %650 = vmatprep.subr.bf16.mxu0 0
        %651 = vmatpush2.bf16.xpose.msra.mxu0 0
        %652 = vmatprep.subr.bf16.mxu0 0
        %653 = vmatpush2.bf16.xpose.msra.mxu0 0
        %654 = vmatprep.subr.bf16.mxu0 0
        %655 = vmatpush2.bf16.xpose.msra.mxu0 0
        %656 = vmatprep.subr.bf16.mxu0 0
        %657 = vmatpush2.bf16.xpose.msra.mxu0 0
        %658 = vmatprep.mubr.bf16.mxu0 %v421
        %659 = vmatmul.mubr.bf16.gmra.mxu0 %v420
        %v660 = vpop.f32.mrf.mxu0
        %v661 = vadd.f32 %v621, %v660
        %v662 = vpop.f32.mrf.mxu0
        %v663 = vpop.f32.mrf.mxu0
        %v664 = vpop.f32.mrf.mxu0
        %665 = vdwg.mxu0
        %v666 = vadd.f32 %v377, %v661
        %667 = vst [vmem:[#allocation2] sm:$0xff] %v666
        %p668 = scmp.eq.s32.totalorder %s21, 1
        // Predicated region
        $region68: #{svm_model_forward.1} parent=58 // pred_check
          %p669 = pneg %p668
        $region69: #{svm_model_forward.1} parent=58 // pred_check_branch
          %671 = sbr.rel (%p669) target = $region71
        $region70: #{svm_model_forward.1} parent=58 // pred_region
          %v672 = vld [vmem:[#allocation2] sm:$0xff]
          %v673 = vld [vmem:[%s4] sm:$0x1]
          %v675 = vlaneseq
          %v676 = vshrl.u32 %v675, 7
          %v677 = vsub.s32 0, %v676
          %v678 = vrot.slane %v673, %v677
          %v680 = vadd.f32 %v672, %v678
          %681 = vst [vmem:[%s370] sm:$0xff] %v680
        $region71: #{svm_model_forward.1} parent=58 // pred_fallthru
          _
        %p682 = scmp.lt.s32.totalorder %s20, 0
        %s683 = scalar_select %p682, %s20, 0
        %s684 = smul.addr %s683, 8
        %s685 = scalar_lea.vmem %s5, %s684
        // Predicated region
        $region72: #{svm_model_forward.1} parent=58 // pred_check
          %p686 = pneg %p168
        $region73: #{svm_model_forward.1} parent=58 // pred_check_branch
          %688 = sbr.rel (%p686) target = $region75
        $region74: #{svm_model_forward.1} parent=58 // pred_region
          _
        $region75: #{svm_model_forward.1} parent=58 // pred_fallthru
          _
        // Predicated region
        $region76: #{svm_model_forward.1} parent=58 // pred_check
          %p689 = pneg %p168
        $region77: #{svm_model_forward.1} parent=58 // pred_check_branch
          %691 = sbr.rel (%p689) target = $region79
        $region78: #{svm_model_forward.1} parent=58 // pred_region
          %p692 = scmp.lt.s32.totalorder %s20, 0
          %s693 = scalar_select %p692, %s20, 0
          %s694 = smul.addr %s693, 8
          %s695 = scalar_lea.vmem %s5, %s694
        $region79: #{svm_model_forward.1} parent=58 // pred_fallthru
          _
      $region59: #{svm_model_forward.1} parent=5 // pred_fallthru
        _
      %p696 = scmp.le.s32.totalorder 2, %s11
      // Predicated region
      $region80: #{svm_model_forward.1} parent=5 // pred_check
        %p697 = pneg %p696
      $region81: #{svm_model_forward.1} parent=5 // pred_check_branch
        %699 = sbr.rel (%p697) target = $region83
      $region82: #{svm_model_forward.1} parent=5 // pred_region
        %s700 = ssub.s32 %s11, 2
      $region83: #{svm_model_forward.1} parent=5 // pred_fallthru
        _
    $region6: #{svm_model_forward.1} parent=1 // loop_footer
      %s15 = sadd.s32 1, %s11
    $region7: #{svm_model_forward.1} parent=1 // loop_footer_branch
      %10 = sbr.rel target = $region3
    $region8: #{svm_model_forward.1} parent=1 // loop_exit
      _

</llo_original>
